<compile_context>
chip_gen: v7x
topology: tpu7x:2x2x1
jax: 0.10.0
libtpu: 0.0.40
codegen_flags: <defaults>
</compile_context>

<pallas_src>
import functools
import math

import jax
import jax.numpy as jnp
from jax import lax
from jax.experimental import pallas as pl
from jax.experimental.pallas import tpu as pltpu


# ----------------------------------------------------------------------------
# Kernel
# ----------------------------------------------------------------------------
def double_mha_kernel(x_ref, w_ref, mask_ref, fold_ref, comp_ref, align_ref, *,
                      heads_number, matmul_dtype, approx_recip):
    H = heads_number
    bT, T, E = x_ref.shape
    D = E // H

    x = x_ref[...]                       # (bT, T, E)
    xm = x.astype(matmul_dtype)          # MXU operand (bf16 by default, f32 acc)
    w = w_ref[...]                       # (E, 2H): [qfull/sqrt(H) | attsel^T]

    # ---- utterance scores + head projection in ONE MXU matmul ---------------
    if T % 8 == 0:
        # sublane-aligned -> the (bT, T, E) -> (bT*T, E) reshape is a free view
        sc = jnp.dot(xm.reshape(bT * T, E), w,
                     preferred_element_type=jnp.float32).reshape(bT, T, 2 * H)
    else:
        # avoid materializing a relayout copy of the x tile (T not 8-aligned)
        sc = lax.dot_general(xm, w, dimension_numbers=(((2,), (0,)), ((), ())),
                             preferred_element_type=jnp.float32)     # (bT, T, 2H)

    # one relayout to lane-dense (T on the lane axis); everything downstream
    # works on compact (bT, H, T)-shaped arrays.
    sc = jnp.swapaxes(sc, 1, 2)                                      # (bT, 2H, T)
    scores = sc[:, :H, :]                # (bT, H, T), scale already folded into w
    xa = sc[:, H:, :]                    # (bT, H, T): x projected onto att per head

    # ---- softmax over time (torch: F.softmax(scores, dim=-2)) ---------------
    m = jnp.max(scores, axis=-1, keepdims=True)
    e = jnp.exp(scores - m)
    denom = jnp.sum(e, axis=-1, keepdims=True)
    if approx_recip:
        p = e * pl.reciprocal(denom, approx=True)                    # EUP slot
    else:
        p = e / denom
    # NOTE: padded tail rows of a partial final block may hold non-finite
    # values here; they are masked on writeback so outputs stay correct.
    align_ref[...] = p.astype(align_ref.dtype)                       # lane-dense store

    # ---- head attention (narrow path, eval mode) -----------------------------
    # hs[b,h] = sum_d ct_own[b,h,d]*att[d] == sum_t p[b,h,t]*xa[b,h,t]
    hs = jnp.sum(p * xa, axis=-1, keepdims=True)                     # (bT, H, 1)
    m2 = jnp.max(hs, axis=1, keepdims=True)
    e2 = jnp.exp(hs - m2)
    p2 = e2 / jnp.sum(e2, axis=1, keepdims=True)                     # exact (cheap)

    # ---- compressed representation -------------------------------------------
    # fold p2 into p, contract T on the MXU, then pick each head's own feature
    # slice with the block mask and collapse the H blocks with a tiny matmul.
    r = (p2 * p).astype(matmul_dtype)                                # (bT, H, T)
    ctr = jnp.einsum('bht,bte->bhe', r, xm,
                     preferred_element_type=jnp.float32)             # (bT, H, E)
    s = jnp.sum(ctr * mask_ref[...][None, :, :], axis=1)             # (bT, E) f32
    comp = jnp.dot(s, fold_ref[...],
                   preferred_element_type=jnp.float32)               # (bT, D)
    comp_ref[...] = comp.astype(comp_ref.dtype)

    # TODO(synk): training-time random attention masking (__maskAttention) is a
    # stochastic train-only path and is not part of the eval forward; omitted.
    # TODO(synk): for very long utterances whose minimum (8-row) tile no longer
    # fits VMEM, add a T grid axis with an online-softmax accumulator.


# ----------------------------------------------------------------------------
# Tile-size / VMEM budgeting
# ----------------------------------------------------------------------------
def _default_vmem_limit_bytes():
    # v5e/v6e: 128 MiB VMEM per TensorCore -> ~96 MiB budget; v7x: 64 MiB/TC
    # -> ~48 MiB.  Leave ~25% headroom for Mosaic-internal scratch.
    try:
        cap = int(pltpu.get_tpu_info().vmem_capacity_bytes)
    except Exception:
        cap = 64 << 20                      # conservative (v7x-sized) fallback
    return max(32 << 20, min(96 << 20, (cap * 3) // 4))


def _vmem_bytes_estimate(tile_b, T, E, H, x_itemsize, out_itemsize, mm_itemsize):
    """Generous per-grid-step VMEM footprint estimate (bytes)."""
    D = E // H
    r8 = lambda n: ((n + 7) // 8) * 8
    r128 = lambda n: ((n + 127) // 128) * 128
    x_blk = tile_b * T * E * x_itemsize                       # one x block
    xm_cp = tile_b * T * E * mm_itemsize if mm_itemsize != x_itemsize else 0
    sc_pad = tile_b * r8(T) * r128(2 * H) * 4                 # lane-padded dot output
    sc_t = tile_b * r8(2 * H) * r128(T) * 4                   # transposed compact copy
    small = 6 * tile_b * r8(H) * r128(T) * 4                  # scores/xa/e/p/r/hs work set
    ctr = tile_b * r8(H) * r128(E) * 4
    s_e = r8(tile_b) * r128(E) * 4
    aln_blk = tile_b * r8(H) * r128(T) * out_itemsize
    cmp_blk = r8(tile_b) * r128(D) * out_itemsize
    consts = (r8(E) * r128(2 * H) * mm_itemsize + r8(H) * r128(E) * 4
              + r8(E) * r128(D) * 4)
    return (2 * x_blk + xm_cp + sc_pad + sc_t + small + ctr + s_e
            + 2 * aln_blk + 2 * cmp_blk + consts)


def _pick_tile_b(B, T, E, H, x_itemsize, out_itemsize, mm_itemsize, vmem_limit):
    budget = int(vmem_limit * 0.9)

    def fits(tb):
        return _vmem_bytes_estimate(tb, T, E, H, x_itemsize, out_itemsize,
                                    mm_itemsize) <= budget

    if B <= 8:
        return B                            # block dim must equal B when B < 8
    if B < 16 and fits(B):
        return B
    cap = B
    if B >= 16:
        # keep >= 2 grid steps so dual-TensorCore chips (v7x) can shard the
        # "parallel" batch axis across both cores.
        cap = max(8, (((B + 1) // 2) // 8) * 8)
    tile = max(8, min(cap, (B // 8) * 8, 4096))
    while tile > 8 and not fits(tile):
        tile -= 8
    return tile


# ----------------------------------------------------------------------------
# Wrapper
# ----------------------------------------------------------------------------
def double_mha(x, query, att, heads_number, *, batch_tile=None,
               vmem_limit_bytes=None, matmul_dtype=jnp.bfloat16,
               approx_reciprocal=True, transpose_alignment=True):
    """x: (B, T, E), query: (D, H), att: (D, 1).

    Returns (compressedRepresentation (B, D), alignment (B, T, H)) matching the
    eval-mode forward of the PyTorch DoubleMHA module.  Set
    transpose_alignment=False to receive the alignment in its lane-dense
    (B, H, T) layout and skip the HBM transpose.  Callers may pass x in
    bfloat16 to halve HBM traffic (f32 accumulation is kept in-kernel).
    """
    B, T, E = x.shape
    H = heads_number
    assert E % H == 0
    D = E // H
    assert query.shape == (D, H)
    assert att.shape == (D, 1)
    out_dtype = x.dtype
    f32 = jnp.float32

    # ---- tiny constant operands (built once, resident in VMEM) --------------
    blk_col = jnp.kron(jnp.eye(H, dtype=f32), jnp.ones((D, 1), f32))     # (E, H)
    # NOTE: the PyTorch code scales by sqrt(query.size(-1)) == sqrt(heads_number)
    # (not sqrt(head_size)); reproduced faithfully and folded into the weights.
    inv_sqrt_dk = 1.0 / math.sqrt(H)
    qfull = blk_col * jnp.tile(query.astype(f32), (H, 1)) * inv_sqrt_dk  # (E, H)
    attsel_t = blk_col * jnp.tile(att.astype(f32), (H, 1))               # (E, H)
    w = jnp.concatenate([qfull, attsel_t], axis=1).astype(matmul_dtype)  # (E, 2H)
    mask_he = jnp.kron(jnp.eye(H, dtype=f32), jnp.ones((1, D), f32))     # (H, E)
    fold = jnp.kron(jnp.ones((H, 1), f32), jnp.eye(D, dtype=f32))        # (E, D)

    if vmem_limit_bytes is None:
        vmem_limit_bytes = _default_vmem_limit_bytes()

    x_item = jnp.dtype(x.dtype).itemsize
    mm_item = jnp.dtype(matmul_dtype).itemsize
    out_item = jnp.dtype(out_dtype).itemsize
    if batch_tile is None:
        tile_b = _pick_tile_b(B, T, E, H, x_item, out_item, mm_item,
                              vmem_limit_bytes)
    else:
        tile_b = min(batch_tile, B)
    grid = (pl.cdiv(B, tile_b),)

    grid_spec = pltpu.PrefetchScalarGridSpec(
        num_scalar_prefetch=0,
        grid=grid,
        in_specs=[
            pl.BlockSpec((tile_b, T, E), lambda i: (i, 0, 0)),   # streamed per tile
            pl.BlockSpec((E, 2 * H), lambda i: (0, 0)),          # resident constant
            pl.BlockSpec((H, E), lambda i: (0, 0)),              # resident constant
            pl.BlockSpec((E, D), lambda i: (0, 0)),              # resident constant
        ],
        out_specs=[
            pl.BlockSpec((tile_b, D), lambda i: (i, 0)),
            pl.BlockSpec((tile_b, H, T), lambda i: (i, 0, 0)),   # lane-dense (T last)
        ],
    )

    comp, align_bht = pl.pallas_call(
        functools.partial(double_mha_kernel, heads_number=H,
                          matmul_dtype=matmul_dtype,
                          approx_recip=approx_reciprocal),
        out_shape=(jax.ShapeDtypeStruct((B, D), out_dtype),
                   jax.ShapeDtypeStruct((B, H, T), out_dtype)),
        grid_spec=grid_spec,
        compiler_params=pltpu.CompilerParams(
            dimension_semantics=("parallel",),
            vmem_limit_bytes=int(vmem_limit_bytes)),
    )(x, w, mask_he, fold)

    if transpose_alignment:
        return comp, jnp.transpose(align_bht, (0, 2, 1))   # module's (B, T, H) layout
    return comp, align_bht


# ----------------------------------------------------------------------------
# Pure-JAX reference (high precision) mirroring the PyTorch forward (eval mode)
# ----------------------------------------------------------------------------
def double_mha_reference(x, query, att, heads_number):
    B, T, E = x.shape
    H = heads_number
    D = E // H
    hp = lax.Precision.HIGHEST
    xh = x.reshape(B, T, H, D)
    scores = jnp.einsum('bthd,dh->bth', xh, query, precision=hp) / math.sqrt(H)
    p = jax.nn.softmax(scores, axis=1)                       # alignment (B, T, H)
    ct = jnp.einsum('bth,bthd->bhd', p, xh, precision=hp)    # (B, H, D)
    hs = jnp.einsum('bhd,d->bh', ct, att[:, 0], precision=hp)
    p2 = jax.nn.softmax(hs, axis=-1)
    comp = jnp.einsum('bh,bhd->bd', p2, ct, precision=hp)    # (B, D)
    return comp, p


if __name__ == "__main__":
    # small shapes consistent with the module: encoder_size=32, heads=4
    B, T, E, H = 2, 8, 32, 4
    D = E // H

    key = jax.random.PRNGKey(0)
    kx, kq, ka = jax.random.split(key, 3)
    x = jax.random.normal(kx, (B, T, E), dtype=jnp.float32)
    # deterministic xavier_normal-style init (gain=1): std = sqrt(2/(fan_in+fan_out))
    query = jax.random.normal(kq, (D, H), dtype=jnp.float32) * math.sqrt(2.0 / (D + H))
    att = jax.random.normal(ka, (D, 1), dtype=jnp.float32) * math.sqrt(2.0 / (D + 1))

    comp_ref, align_ref = double_mha_reference(x, query, att, H)

    # default config: bf16 MXU operands, approximate T-softmax reciprocal
    comp, align = double_mha(x, query, att, H)
    jax.block_until_ready((comp, align))
    assert comp.shape == (B, D) and align.shape == (B, T, H)
    assert jnp.allclose(comp, comp_ref, atol=5e-2, rtol=5e-2)
    assert jnp.allclose(align, align_ref, atol=5e-2, rtol=5e-2)

    # strict config: f32 MXU operands, exact reciprocals -> tight tolerance
    comp32, align32 = double_mha(x, query, att, H, matmul_dtype=jnp.float32,
                                 approx_reciprocal=False)
    jax.block_until_ready((comp32, align32))
    assert jnp.allclose(comp32, comp_ref, atol=2e-3, rtol=2e-3)
    assert jnp.allclose(align32, align_ref, atol=2e-3, rtol=2e-3)

    # multi-step grid path (batch tiling with >= 2 grid steps)
    B2 = 16
    x2 = jax.random.normal(jax.random.PRNGKey(1), (B2, T, E), dtype=jnp.float32)
    comp2_ref, align2_ref = double_mha_reference(x2, query, att, H)
    comp2, align2 = double_mha(x2, query, att, H)
    jax.block_until_ready((comp2, align2))
    assert comp2.shape == (B2, D) and align2.shape == (B2, T, H)
    assert jnp.allclose(comp2, comp2_ref, atol=5e-2, rtol=5e-2)
    assert jnp.allclose(align2, align2_ref, atol=5e-2, rtol=5e-2)

    print("KERNEL_OK")
</pallas_src>

<mosaic_0001>
module attributes {stable_mosaic.version = 11 : i64} {
  func.func @double_mha_kernel(%arg0: i32, %arg1: memref<2x8x32xf32, #tpu.memory_space<vmem>>, %arg2: memref<32x8xbf16, #tpu.memory_space<vmem>>, %arg3: memref<4x32xf32, #tpu.memory_space<vmem>>, %arg4: memref<32x8xf32, #tpu.memory_space<vmem>>, %arg5: memref<2x8xf32, #tpu.memory_space<vmem>>, %arg6: memref<2x4x8xf32, #tpu.memory_space<vmem>>) attributes {dimension_semantics = [#tpu.dimension_semantics<parallel>], iteration_bounds = array<i64: 1>, scalar_prefetch = 0 : i64, scratch_operands = 0 : i64, tpu.core_type = #tpu.core_type<tc>, window_params = [{transform_indices = @transform_0, window_bounds = array<i64: 2, 8, 32>}, {pipeline_mode = #tpu.pipeline_mode<synchronous>, transform_indices = @transform_1, window_bounds = array<i64: 32, 8>}, {pipeline_mode = #tpu.pipeline_mode<synchronous>, transform_indices = @transform_2, window_bounds = array<i64: 4, 32>}, {pipeline_mode = #tpu.pipeline_mode<synchronous>, transform_indices = @transform_3, window_bounds = array<i64: 32, 8>}, {transform_indices = @transform_4, window_bounds = array<i64: 2, 8>}, {transform_indices = @transform_5, window_bounds = array<i64: 2, 4, 8>}]} {
    %c0 = arith.constant 0 : index
    %c0_0 = arith.constant 0 : index
    %c0_1 = arith.constant 0 : index
    %0 = vector.load %arg1[%c0, %c0_0, %c0_1] : memref<2x8x32xf32, #tpu.memory_space<vmem>>, vector<2x8x32xf32>
    %1 = arith.truncf %0 : vector<2x8x32xf32> to vector<2x8x32xbf16>
    %c0_2 = arith.constant 0 : index
    %c0_3 = arith.constant 0 : index
    %2 = vector.load %arg2[%c0_2, %c0_3] : memref<32x8xbf16, #tpu.memory_space<vmem>>, vector<32x8xbf16>
    %3 = vector.shape_cast %1 : vector<2x8x32xbf16> to vector<16x32xbf16>
    %cst = arith.constant dense<0.000000e+00> : vector<16x8xf32>
    %4 = tpu.matmul %3, %2, %cst {dimension_numbers = #tpu.dot_dimension_numbers<[1], [0], [0], [1], [0, 0, 1, 1], [], []>} : vector<16x32xbf16>, vector<32x8xbf16>, vector<16x8xf32> -> vector<16x8xf32>
    %5 = vector.shape_cast %4 : vector<16x8xf32> to vector<2x8x8xf32>
    %6 = tpu.transpose %5, [0, 2, 1] : vector<2x8x8xf32> -> vector<2x8x8xf32>
    %7 = vector.extract_strided_slice %6 {offsets = [0, 0, 0], sizes = [2, 4, 8], strides = [1, 1, 1]} : vector<2x8x8xf32> to vector<2x4x8xf32>
    %8 = vector.extract_strided_slice %6 {offsets = [0, 4, 0], sizes = [2, 4, 8], strides = [1, 1, 1]} : vector<2x8x8xf32> to vector<2x4x8xf32>
    %cst_4 = arith.constant dense<0xFF800000> : vector<2x4xf32>
    %9 = vector.multi_reduction <maximumf>, %7, %cst_4 [2] : vector<2x4x8xf32> to vector<2x4xf32>
    %10 = vector.shape_cast %9 : vector<2x4xf32> to vector<2x4x1xf32>
    %11 = vector.broadcast %10 : vector<2x4x1xf32> to vector<2x4x8xf32>
    %12 = arith.subf %7, %11 : vector<2x4x8xf32>
    %13 = math.exp %12 : vector<2x4x8xf32>
    %cst_5 = arith.constant dense<0.000000e+00> : vector<2x4xf32>
    %14 = vector.multi_reduction <add>, %13, %cst_5 [2] : vector<2x4x8xf32> to vector<2x4xf32>
    %15 = vector.shape_cast %14 : vector<2x4xf32> to vector<2x4x1xf32>
    %16 = tpu.reciprocal %15 {approx = true} : vector<2x4x1xf32> -> vector<2x4x1xf32>
    %17 = vector.broadcast %16 : vector<2x4x1xf32> to vector<2x4x8xf32>
    %18 = arith.mulf %13, %17 : vector<2x4x8xf32>
    %c0_6 = arith.constant 0 : index
    %c0_7 = arith.constant 0 : index
    %c0_8 = arith.constant 0 : index
    %19 = vector.load %arg6[%c0_6, %c0_7, %c0_8] : memref<2x4x8xf32, #tpu.memory_space<vmem>>, vector<2x4x8xf32>
    tpu.vector_store %arg6[%c0_6, %c0_7, %c0_8], %18 {strides = array<i32>} : memref<2x4x8xf32, #tpu.memory_space<vmem>>, vector<2x4x8xf32>,
    %20 = arith.mulf %18, %8 : vector<2x4x8xf32>
    %cst_9 = arith.constant dense<0.000000e+00> : vector<2x4xf32>
    %21 = vector.multi_reduction <add>, %20, %cst_9 [2] : vector<2x4x8xf32> to vector<2x4xf32>
    %22 = vector.shape_cast %21 : vector<2x4xf32> to vector<2x4x1xf32>
    %cst_10 = arith.constant dense<0xFF800000> : vector<2x1xf32>
    %23 = vector.multi_reduction <maximumf>, %22, %cst_10 [1] : vector<2x4x1xf32> to vector<2x1xf32>
    %24 = vector.shape_cast %23 : vector<2x1xf32> to vector<2x1x1xf32>
    %25 = vector.broadcast %24 : vector<2x1x1xf32> to vector<2x4x1xf32>
    %26 = arith.subf %22, %25 : vector<2x4x1xf32>
    %27 = math.exp %26 : vector<2x4x1xf32>
    %cst_11 = arith.constant dense<0.000000e+00> : vector<2x1xf32>
    %28 = vector.multi_reduction <add>, %27, %cst_11 [1] : vector<2x4x1xf32> to vector<2x1xf32>
    %29 = vector.shape_cast %28 : vector<2x1xf32> to vector<2x1x1xf32>
    %30 = vector.broadcast %29 : vector<2x1x1xf32> to vector<2x4x1xf32>
    %31 = arith.divf %27, %30 : vector<2x4x1xf32>
    %32 = vector.broadcast %31 : vector<2x4x1xf32> to vector<2x4x8xf32>
    %33 = arith.mulf %32, %18 : vector<2x4x8xf32>
    %34 = arith.truncf %33 : vector<2x4x8xf32> to vector<2x4x8xbf16>
    "tpu.trace_start"() <{level = 10 : i32, message = "bht,bte->bhe"}> : () -> ()
    %cst_12 = arith.constant dense<0.000000e+00> : vector<2x4x32xf32>
    %35 = tpu.matmul %34, %1, %cst_12 {dimension_numbers = #tpu.dot_dimension_numbers<[2], [1], [1], [2], [0, 0, 0, 1, 1, 2], [0], [0]>} : vector<2x4x8xbf16>, vector<2x8x32xbf16>, vector<2x4x32xf32> -> vector<2x4x32xf32>
    "tpu.trace_stop"() : () -> ()
    %c0_13 = arith.constant 0 : index
    %c0_14 = arith.constant 0 : index
    %36 = vector.load %arg3[%c0_13, %c0_14] : memref<4x32xf32, #tpu.memory_space<vmem>>, vector<4x32xf32>
    %37 = vector.shape_cast %36 : vector<4x32xf32> to vector<1x4x32xf32>
    %38 = vector.broadcast %37 : vector<1x4x32xf32> to vector<2x4x32xf32>
    %39 = arith.mulf %35, %38 : vector<2x4x32xf32>
    %cst_15 = arith.constant dense<0.000000e+00> : vector<2x32xf32>
    %40 = vector.multi_reduction <add>, %39, %cst_15 [1] : vector<2x4x32xf32> to vector<2x32xf32>
    %c0_16 = arith.constant 0 : index
    %c0_17 = arith.constant 0 : index
    %41 = vector.load %arg4[%c0_16, %c0_17] : memref<32x8xf32, #tpu.memory_space<vmem>>, vector<32x8xf32>
    %cst_18 = arith.constant dense<0.000000e+00> : vector<2x8xf32>
    %42 = tpu.matmul %40, %41, %cst_18 {dimension_numbers = #tpu.dot_dimension_numbers<[1], [0], [0], [1], [0, 0, 1, 1], [], []>} : vector<2x32xf32>, vector<32x8xf32>, vector<2x8xf32> -> vector<2x8xf32>
    %c0_19 = arith.constant 0 : index
    %c0_20 = arith.constant 0 : index
    %43 = vector.load %arg5[%c0_19, %c0_20] : memref<2x8xf32, #tpu.memory_space<vmem>>, vector<2x8xf32>
    tpu.vector_store %arg5[%c0_19, %c0_20], %42 {strides = array<i32>} : memref<2x8xf32, #tpu.memory_space<vmem>>, vector<2x8xf32>,
    return
  }
  func.func @transform_0(%arg0: i32) -> (i32, i32, i32) {
    %c0_i32 = arith.constant 0 : i32
    %c0_i32_0 = arith.constant 0 : i32
    %c0_i32_1 = arith.constant 0 : i32
    return %arg0, %c0_i32, %c0_i32_0 : i32, i32, i32
  }
  func.func @transform_1(%arg0: i32) -> (i32, i32) {
    %c0_i32 = arith.constant 0 : i32
    %c0_i32_0 = arith.constant 0 : i32
    %c0_i32_1 = arith.constant 0 : i32
    return %c0_i32, %c0_i32_0 : i32, i32
  }
  func.func @transform_2(%arg0: i32) -> (i32, i32) {
    %c0_i32 = arith.constant 0 : i32
    %c0_i32_0 = arith.constant 0 : i32
    %c0_i32_1 = arith.constant 0 : i32
    return %c0_i32, %c0_i32_0 : i32, i32
  }
  func.func @transform_3(%arg0: i32) -> (i32, i32) {
    %c0_i32 = arith.constant 0 : i32
    %c0_i32_0 = arith.constant 0 : i32
    %c0_i32_1 = arith.constant 0 : i32
    return %c0_i32, %c0_i32_0 : i32, i32
  }
  func.func @transform_4(%arg0: i32) -> (i32, i32) {
    %c0_i32 = arith.constant 0 : i32
    %c0_i32_0 = arith.constant 0 : i32
    return %arg0, %c0_i32 : i32, i32
  }
  func.func @transform_5(%arg0: i32) -> (i32, i32, i32) {
    %c0_i32 = arith.constant 0 : i32
    %c0_i32_0 = arith.constant 0 : i32
    %c0_i32_1 = arith.constant 0 : i32
    return %arg0, %c0_i32, %c0_i32_0 : i32, i32, i32
  }
}

</mosaic_0001>

<llo_original>
// kernel: tpu_custom_call.1
$region0: #{tpu_custom_call.1}
  #allocation0 [shape = 'u32[]', space=smem, size = 0x4, offset = 0x4, fixed_abs, tag = 'smem constant byte address 0x4 - core index']
  #allocation1 [shape = 'u32[144,128]{1,0:T(1,128)}', space=vmem, size = 0x12000, scoped, tag = 'internal scratch']
  %s0 = inlined_call_operand.vmem [shape: f32[2,8,32], index: 0, kind: input, shape index: {}]
  %s1 = inlined_call_operand.vmem [shape: bf16[32,8], index: 1, kind: input, shape index: {}]
  %s2 = inlined_call_operand.vmem [shape: f32[4,32], index: 2, kind: input, shape index: {}]
  %s3 = inlined_call_operand.vmem [shape: f32[32,8], index: 3, kind: input, shape index: {}]
  %s4 = inlined_call_operand.hbm [shape: f32[2,8], index: 4, kind: output, shape index: {0}]
  %s5 = inlined_call_operand.hbm [shape: f32[2,4,8], index: 5, kind: output, shape index: {1}]
  %6 = xla_tuple %s4, %s5
  %s7 = sld [smem:[#allocation0]]
  $region34: #{tpu_custom_call.1} parent=0
    _
  %s9 = ssub.s32 1, %s7
  %s10 = scalar_select 0, %s9, %s7
  $region1: #{tpu_custom_call.1} parent=0
    #allocation2 [shape = 'u8[1024]{0}', space=vmem, size = 0x400, scoped, tag = 'output window, operand 0, single buffered']
    #allocation3 [shape = 's32[1]{0}', space=sflag, size = 0x4, scoped, tag = 'scoped memory for tpu_custom_call.1']
    #allocation4 [shape = 'u8[4096]{0}', space=vmem, size = 0x1000, scoped, tag = 'output window, operand 1, single buffered']
    #allocation5 [shape = 's32[1]{0}', space=sflag, size = 0x4, scoped, tag = 'scoped memory for tpu_custom_call.1']
    %11 = vsyncpa [#allocation3], 0
    %12 = vsyncpa [#allocation5], 0
    // Predicated region
    $region2: #{tpu_custom_call.1} parent=1 // pred_check
      _
    $region3: #{tpu_custom_call.1} parent=1 // pred_check_branch
      %14 = sbr.rel (0) target = $region5
    $region4: #{tpu_custom_call.1} parent=1 // pred_region
      _
    $region5: #{tpu_custom_call.1} parent=1 // pred_fallthru
      _
    // Predicated region
    $region6: #{tpu_custom_call.1} parent=1 // pred_check
      _
    $region7: #{tpu_custom_call.1} parent=1 // pred_check_branch
      %16 = sbr.rel (0) target = $region9
    $region8: #{tpu_custom_call.1} parent=1 // pred_region
      _
    $region9: #{tpu_custom_call.1} parent=1 // pred_fallthru
      _
    // Predicated region
    $region10: #{tpu_custom_call.1} parent=1 // pred_check
      _
    $region11: #{tpu_custom_call.1} parent=1 // pred_check_branch
      %18 = sbr.rel (0) target = $region13
    $region12: #{tpu_custom_call.1} parent=1 // pred_region
      _
    $region13: #{tpu_custom_call.1} parent=1 // pred_fallthru
      _
    // Predicated region
    $region14: #{tpu_custom_call.1} parent=1 // pred_check
      _
    $region15: #{tpu_custom_call.1} parent=1 // pred_check_branch
      %20 = sbr.rel (0) target = $region17
    $region16: #{tpu_custom_call.1} parent=1 // pred_region
      _
    $region17: #{tpu_custom_call.1} parent=1 // pred_fallthru
      _
    %v22 = vld [vmem:[%s0] sm:$0xff]
    %v23 = vld [vmem:[%s0 + $0x8] sm:$0xff]
    %v24 = vpack.c.bf16 %v22, %v22
    %v25 = vpack.c.bf16 %v23, %v23
    %v26 = vld [vmem:[%s1] sm:$0xf]
    %v27 = vld [vmem:[%s1 + $0x4] sm:$0xf]
    %v28 = vld [vmem:[%s1 + $0x8] sm:$0xf]
    %v29 = vld [vmem:[%s1 + $0xc] sm:$0xf]
    %v32 = vunpack.c.l.b16 %v24
    %v33 = vunpack.c.l.b16 %v25
    %v34 = vpack.c.b16 %v33, %v32
    %v39 = vunpack.c.l.b16 %v26
    %v40 = vunpack.c.l.b16 %v27
    %v41 = vunpack.c.l.b16 %v28
    %v42 = vunpack.c.l.b16 %v29
    %v43 = vpack.c.b16 %v40, %v39
    %v44 = vpack.c.b16 %v42, %v41
    %vm47 = vcmask 261120
    %v49 = vsel %vm47, %v34, 0
    %51 = vmatprep.subr.bf16.mxu0 0
    %52 = vmatpush1.bf16.msra.mxu0 %v43
    %53 = vmatprep.subr.bf16.mxu0 0
    %54 = vmatpush1.bf16.msra.mxu0 %v44
    %55 = vmatprep.subr.bf16.mxu0 0
    %56 = vmatpush1.bf16.msra.mxu0 0
    %57 = vmatprep.subr.bf16.mxu0 0
    %58 = vmatpush1.bf16.msra.mxu0 0
    %59 = vmatprep.subr.bf16.mxu0 0
    %60 = vmatpush1.bf16.msra.mxu0 0
    %61 = vmatprep.subr.bf16.mxu0 0
    %62 = vmatpush1.bf16.msra.mxu0 0
    %63 = vmatprep.subr.bf16.mxu0 0
    %64 = vmatpush1.bf16.msra.mxu0 0
    %65 = vmatprep.subr.bf16.mxu0 0
    %66 = vmatpush1.bf16.msra.mxu0 0
    %67 = vmatprep.subr.bf16.mxu0 0
    %68 = vmatpush1.bf16.msra.mxu0 0
    %69 = vmatprep.subr.bf16.mxu0 0
    %70 = vmatpush1.bf16.msra.mxu0 0
    %71 = vmatprep.subr.bf16.mxu0 0
    %72 = vmatpush1.bf16.msra.mxu0 0
    %73 = vmatprep.subr.bf16.mxu0 0
    %74 = vmatpush1.bf16.msra.mxu0 0
    %75 = vmatprep.subr.bf16.mxu0 0
    %76 = vmatpush1.bf16.msra.mxu0 0
    %77 = vmatprep.subr.bf16.mxu0 0
    %78 = vmatpush1.bf16.msra.mxu0 0
    %79 = vmatprep.subr.bf16.mxu0 0
    %80 = vmatpush1.bf16.msra.mxu0 0
    %81 = vmatprep.subr.bf16.mxu0 0
    %82 = vmatpush1.bf16.msra.mxu0 0
    %83 = vmatprep.mubr.bf16.mxu0 0
    %84 = vmatmul.mubr.bf16.gmra.mrb[0].mxu0 %v49
    %v85 = vpop.f32.mrb[0].mxu0
    %v86 = vadd.f32 0.0, %v85
    %v87 = vpop.f32.mrb[0].mxu0
    %v88 = vpop.f32.mrb[0].mxu0
    %v89 = vadd.f32 0.0, %v88
    %v90 = vpop.f32.mrb[0].mxu0
    %91 = vdwg.mxu0
    %92 = vxpose.xlu0.b32.start [1/16] %v86, 128
    %93 = vxpose.xlu0.b32.cont [2/16] 0.0, 128
    %94 = vxpose.xlu0.b32.cont [3/16] 0.0, 128
    %95 = vxpose.xlu0.b32.cont [4/16] 0.0, 128
    %96 = vxpose.xlu0.b32.cont [5/16] 0.0, 128
    %97 = vxpose.xlu0.b32.cont [6/16] 0.0, 128
    %98 = vxpose.xlu0.b32.cont [7/16] 0.0, 128
    %99 = vxpose.xlu0.b32.cont [8/16] 0.0, 128
    %100 = vxpose.xlu0.b32.cont [9/16] 0.0, 128
    %101 = vxpose.xlu0.b32.cont [10/16] 0.0, 128
    %102 = vxpose.xlu0.b32.cont [11/16] 0.0, 128
    %103 = vxpose.xlu0.b32.cont [12/16] 0.0, 128
    %104 = vxpose.xlu0.b32.cont [13/16] 0.0, 128
    %105 = vxpose.xlu0.b32.cont [14/16] 0.0, 128
    %106 = vxpose.xlu0.b32.cont [15/16] 0.0, 128
    %107 = vxpose.xlu0.b32.end [16/16] 0.0, 128
    %v108 = vpop.trf.xlu0
    %v109 = vpop.trf.xlu0
    %v110 = vpop.trf.xlu0
    %v111 = vpop.trf.xlu0
    %v112 = vpop.trf.xlu0
    %v113 = vpop.trf.xlu0
    %v114 = vpop.trf.xlu0
    %v115 = vpop.trf.xlu0
    %v116 = vpop.trf.xlu0
    %v117 = vpop.trf.xlu0
    %v118 = vpop.trf.xlu0
    %v119 = vpop.trf.xlu0
    %v120 = vpop.trf.xlu0
    %v121 = vpop.trf.xlu0
    %v122 = vpop.trf.xlu0
    %v123 = vpop.trf.xlu0
    %124 = vxpose.xlu0.b32.start [1/16] %v89, 128
    %125 = vxpose.xlu0.b32.cont [2/16] 0.0, 128
    %126 = vxpose.xlu0.b32.cont [3/16] 0.0, 128
    %127 = vxpose.xlu0.b32.cont [4/16] 0.0, 128
    %128 = vxpose.xlu0.b32.cont [5/16] 0.0, 128
    %129 = vxpose.xlu0.b32.cont [6/16] 0.0, 128
    %130 = vxpose.xlu0.b32.cont [7/16] 0.0, 128
    %131 = vxpose.xlu0.b32.cont [8/16] 0.0, 128
    %132 = vxpose.xlu0.b32.cont [9/16] 0.0, 128
    %133 = vxpose.xlu0.b32.cont [10/16] 0.0, 128
    %134 = vxpose.xlu0.b32.cont [11/16] 0.0, 128
    %135 = vxpose.xlu0.b32.cont [12/16] 0.0, 128
    %136 = vxpose.xlu0.b32.cont [13/16] 0.0, 128
    %137 = vxpose.xlu0.b32.cont [14/16] 0.0, 128
    %138 = vxpose.xlu0.b32.cont [15/16] 0.0, 128
    %139 = vxpose.xlu0.b32.end [16/16] 0.0, 128
    %v140 = vpop.trf.xlu0
    %v141 = vpop.trf.xlu0
    %v142 = vpop.trf.xlu0
    %v143 = vpop.trf.xlu0
    %v144 = vpop.trf.xlu0
    %v145 = vpop.trf.xlu0
    %v146 = vpop.trf.xlu0
    %v147 = vpop.trf.xlu0
    %v148 = vpop.trf.xlu0
    %v149 = vpop.trf.xlu0
    %v150 = vpop.trf.xlu0
    %v151 = vpop.trf.xlu0
    %v152 = vpop.trf.xlu0
    %v153 = vpop.trf.xlu0
    %v154 = vpop.trf.xlu0
    %v155 = vpop.trf.xlu0
    %vm156 = vcmask 60416
    %v157 = vsel %vm156, %v108, -inf
    %158 = vmax.xlane.f32.xlu0 %v157
    %v159 = vpop.xlane.xlu0 %158
    %v160 = vsel %vm156, %v140, -inf
    %161 = vmax.xlane.f32.xlu0 %v160
    %v162 = vpop.xlane.xlu0 %161
    %v163 = vsub.f32 %v108, %v159
    %v164 = vsub.f32 %v140, %v162
    %v165 = vmul.f32 %v163, 1.442695
    %v166 = vpow.pop %v165
    %v167 = vmul.f32 %v164, 1.442695
    %v168 = vpow.pop %v167
    %v169 = vsel %vm156, %v166, 0.0
    %170 = vadd.xlane.f32.xlu0 %v169
    %v171 = vpop.xlane.xlu0 %170
    %v172 = vsel %vm156, %v168, 0.0
    %173 = vadd.xlane.f32.xlu0 %v172
    %v174 = vpop.xlane.xlu0 %173
    %v175 = vrcp.pop %v171
    %v176 = vrcp.pop %v174
    %v177 = vmul.f32 %v166, %v175
    %v178 = vmul.f32 %v168, %v176
    %179 = vst.msk [vmem:[#allocation4] sm:$0xf] %vm156, %v177
    %180 = vst.msk [vmem:[#allocation4 + $0x4] sm:$0xf] %vm156, %v178
    %v183 = vrot.slane %v108, 4
    %v184 = vrot.slane %v140, 4
    %v187 = vmul.f32 %v177, %v183
    %v188 = vmul.f32 %v178, %v184
    %v189 = vsel %vm156, %v187, 0.0
    %190 = vadd.xlane.f32.xlu0 %v189
    %v191 = vpop.xlane.xlu0 %190
    %v192 = vsel %vm156, %v188, 0.0
    %193 = vadd.xlane.f32.xlu0 %v192
    %v194 = vpop.xlane.xlu0 %193
    %vm195 = vcmask 1043456
    %v196 = vsel %vm195, %v191, -inf
    %v197 = vrot.slane %v196, 4
    %v198 = vmax.f32 %v196, %v197
    %v199 = vrot.slane %v198, 2
    %v200 = vmax.f32 %v198, %v199
    %v201 = vrot.slane %v200, 1
    %v202 = vmax.f32 %v200, %v201
    %v203 = vsel %vm195, %v194, -inf
    %v204 = vrot.slane %v203, 4
    %v205 = vmax.f32 %v203, %v204
    %v206 = vrot.slane %v205, 2
    %v207 = vmax.f32 %v205, %v206
    %v208 = vrot.slane %v207, 1
    %v209 = vmax.f32 %v207, %v208
    %v210 = vsub.f32 %v191, %v202
    %v211 = vsub.f32 %v194, %v209
    %v212 = vmul.f32 %v210, 1.442695
    %v213 = vpow.pop %v212
    %v214 = vmul.f32 %v211, 1.442695
    %v215 = vpow.pop %v214
    %v216 = vsel %vm195, %v213, 0.0
    %v217 = vrot.slane %v216, 4
    %v218 = vadd.f32 %v216, %v217
    %v219 = vrot.slane %v218, 2
    %v220 = vadd.f32 %v218, %v219
    %v221 = vrot.slane %v220, 1
    %v222 = vadd.f32 %v220, %v221
    %v223 = vsel %vm195, %v215, 0.0
    %v224 = vrot.slane %v223, 4
    %v225 = vadd.f32 %v223, %v224
    %v226 = vrot.slane %v225, 2
    %v227 = vadd.f32 %v225, %v226
    %v228 = vrot.slane %v227, 1
    %v229 = vadd.f32 %v227, %v228
    %v230 = vrcp.pop %v222
    %v231 = vmul.f32 %v213, %v230
    %v232 = vrcp.pop %v229
    %v233 = vmul.f32 %v215, %v232
    %v234 = vmul.f32 %v231, %v177
    %v235 = vmul.f32 %v233, %v178
    %v236 = vpack.c.bf16 %v234, %v234
    %v237 = vpack.c.bf16 %v235, %v235
    %vm238 = vcmask 64512
    %v240 = vsel %vm238, %v236, 0
    %v243 = vsel %vm195, %v24, 0
    %245 = vmatprep.subr.bf16.mxu0 0
    %246 = vmatpush1.bf16.msra.mxu0 %v243
    %247 = vmatprep.subr.bf16.mxu0 0
    %248 = vmatpush1.bf16.msra.mxu0 0
    %249 = vmatprep.subr.bf16.mxu0 0
    %250 = vmatpush1.bf16.msra.mxu0 0
    %251 = vmatprep.subr.bf16.mxu0 0
    %252 = vmatpush1.bf16.msra.mxu0 0
    %253 = vmatprep.subr.bf16.mxu0 0
    %254 = vmatpush1.bf16.msra.mxu0 0
    %255 = vmatprep.subr.bf16.mxu0 0
    %256 = vmatpush1.bf16.msra.mxu0 0
    %257 = vmatprep.subr.bf16.mxu0 0
    %258 = vmatpush1.bf16.msra.mxu0 0
    %259 = vmatprep.subr.bf16.mxu0 0
    %260 = vmatpush1.bf16.msra.mxu0 0
    %261 = vmatprep.subr.bf16.mxu0 0
    %262 = vmatpush1.bf16.msra.mxu0 0
    %263 = vmatprep.subr.bf16.mxu0 0
    %264 = vmatpush1.bf16.msra.mxu0 0
    %265 = vmatprep.subr.bf16.mxu0 0
    %266 = vmatpush1.bf16.msra.mxu0 0
    %267 = vmatprep.subr.bf16.mxu0 0
    %268 = vmatpush1.bf16.msra.mxu0 0
    %269 = vmatprep.subr.bf16.mxu0 0
    %270 = vmatpush1.bf16.msra.mxu0 0
    %271 = vmatprep.subr.bf16.mxu0 0
    %272 = vmatpush1.bf16.msra.mxu0 0
    %273 = vmatprep.subr.bf16.mxu0 0
    %274 = vmatpush1.bf16.msra.mxu0 0
    %275 = vmatprep.subr.bf16.mxu0 0
    %276 = vmatpush1.bf16.msra.mxu0 0
    %277 = vmatprep.mubr.bf16.mxu0 0
    %278 = vmatmul.mubr.bf16.gmra.mrb[0].mxu0 %v240
    %v279 = vpop.f32.mrb[0].mxu0
    %v280 = vadd.f32 0.0, %v279
    %v281 = vpop.f32.mrb[0].mxu0
    %v282 = vpop.f32.mrb[0].mxu0
    %v283 = vpop.f32.mrb[0].mxu0
    %284 = vdwg.mxu0
    %v286 = vsel %vm238, %v237, 0
    %v289 = vsel %vm195, %v25, 0
    %291 = vmatprep.subr.bf16.mxu0 0
    %292 = vmatpush1.bf16.msra.mxu0 %v289
    %293 = vmatprep.subr.bf16.mxu0 0
    %294 = vmatpush1.bf16.msra.mxu0 0
    %295 = vmatprep.subr.bf16.mxu0 0
    %296 = vmatpush1.bf16.msra.mxu0 0
    %297 = vmatprep.subr.bf16.mxu0 0
    %298 = vmatpush1.bf16.msra.mxu0 0
    %299 = vmatprep.subr.bf16.mxu0 0
    %300 = vmatpush1.bf16.msra.mxu0 0
    %301 = vmatprep.subr.bf16.mxu0 0
    %302 = vmatpush1.bf16.msra.mxu0 0
    %303 = vmatprep.subr.bf16.mxu0 0
    %304 = vmatpush1.bf16.msra.mxu0 0
    %305 = vmatprep.subr.bf16.mxu0 0
    %306 = vmatpush1.bf16.msra.mxu0 0
    %307 = vmatprep.subr.bf16.mxu0 0
    %308 = vmatpush1.bf16.msra.mxu0 0
    %309 = vmatprep.subr.bf16.mxu0 0
    %310 = vmatpush1.bf16.msra.mxu0 0
    %311 = vmatprep.subr.bf16.mxu0 0
    %312 = vmatpush1.bf16.msra.mxu0 0
    %313 = vmatprep.subr.bf16.mxu0 0
    %314 = vmatpush1.bf16.msra.mxu0 0
    %315 = vmatprep.subr.bf16.mxu0 0
    %316 = vmatpush1.bf16.msra.mxu0 0
    %317 = vmatprep.subr.bf16.mxu0 0
    %318 = vmatpush1.bf16.msra.mxu0 0
    %319 = vmatprep.subr.bf16.mxu0 0
    %320 = vmatpush1.bf16.msra.mxu0 0
    %321 = vmatprep.subr.bf16.mxu0 0
    %322 = vmatpush1.bf16.msra.mxu0 0
    %323 = vmatprep.mubr.bf16.mxu0 0
    %324 = vmatmul.mubr.bf16.gmra.mrb[0].mxu0 %v286
    %v325 = vpop.f32.mrb[0].mxu0
    %v326 = vadd.f32 0.0, %v325
    %v327 = vpop.f32.mrb[0].mxu0
    %v328 = vpop.f32.mrb[0].mxu0
    %v329 = vpop.f32.mrb[0].mxu0
    %330 = vdwg.mxu0
    %v331 = vld [vmem:[%s2] sm:$0xf]
    %v332 = vmul.f32 %v280, %v331
    %v333 = vmul.f32 %v326, %v331
    %vm334 = vcmask 257024
    %v335 = vsel %vm334, %v332, 0.0
    %v336 = vrot.slane %v335, 4
    %v337 = vadd.f32 %v335, %v336
    %v338 = vrot.slane %v337, 2
    %v339 = vadd.f32 %v337, %v338
    %v340 = vrot.slane %v339, 1
    %v341 = vadd.f32 %v339, %v340
    %v342 = vsel %vm334, %v333, 0.0
    %v343 = vrot.slane %v342, 4
    %v344 = vadd.f32 %v342, %v343
    %v345 = vrot.slane %v344, 2
    %v346 = vadd.f32 %v344, %v345
    %v347 = vrot.slane %v346, 1
    %v348 = vadd.f32 %v346, %v347
    %v349 = vld [vmem:[%s3] sm:$0xff]
    %v350 = vld [vmem:[%s3 + $0x8] sm:$0xff]
    %v351 = vld [vmem:[%s3 + $0x10] sm:$0xff]
    %v352 = vld [vmem:[%s3 + $0x18] sm:$0xff]
    %vm355 = vcmask 1041409
    %v356 = vsel %vm355, %v348, %v341
    %v357 = vsel %vm47, %v356, 0
    %359 = vmatprep.subr.mxu0 0.0
    %360 = vmatpush1.msra.mxu0 %v349
    %361 = vmatprep.subr.mxu0 0.0
    %362 = vmatpush1.msra.mxu0 %v350
    %363 = vmatprep.subr.mxu0 0.0
    %364 = vmatpush1.msra.mxu0 %v351
    %365 = vmatprep.subr.mxu0 0.0
    %366 = vmatpush1.msra.mxu0 %v352
    %367 = vmatprep.subr.mxu0 0.0
    %368 = vmatpush1.msra.mxu0 0.0
    %369 = vmatprep.subr.mxu0 0.0
    %370 = vmatpush1.msra.mxu0 0.0
    %371 = vmatprep.subr.mxu0 0.0
    %372 = vmatpush1.msra.mxu0 0.0
    %373 = vmatprep.subr.mxu0 0.0
    %374 = vmatpush1.msra.mxu0 0.0
    %375 = vmatprep.subr.mxu0 0.0
    %376 = vmatpush1.msra.mxu0 0.0
    %377 = vmatprep.subr.mxu0 0.0
    %378 = vmatpush1.msra.mxu0 0.0
    %379 = vmatprep.subr.mxu0 0.0
    %380 = vmatpush1.msra.mxu0 0.0
    %381 = vmatprep.subr.mxu0 0.0
    %382 = vmatpush1.msra.mxu0 0.0
    %383 = vmatprep.subr.mxu0 0.0
    %384 = vmatpush1.msra.mxu0 0.0
    %385 = vmatprep.subr.mxu0 0.0
    %386 = vmatpush1.msra.mxu0 0.0
    %387 = vmatprep.subr.mxu0 0.0
    %388 = vmatpush1.msra.mxu0 0.0
    %389 = vmatprep.subr.mxu0 0.0
    %390 = vmatpush1.msra.mxu0 0.0
    %391 = vmatprep.subr.mxu0 0.0
    %392 = vmatpush1.msra.mxu0 0.0
    %393 = vmatprep.subr.mxu0 0.0
    %394 = vmatpush1.msra.mxu0 0.0
    %395 = vmatprep.subr.mxu0 0.0
    %396 = vmatpush1.msra.mxu0 0.0
    %397 = vmatprep.subr.mxu0 0.0
    %398 = vmatpush1.msra.mxu0 0.0
    %399 = vmatprep.subr.mxu0 0.0
    %400 = vmatpush1.msra.mxu0 0.0
    %401 = vmatprep.subr.mxu0 0.0
    %402 = vmatpush1.msra.mxu0 0.0
    %403 = vmatprep.subr.mxu0 0.0
    %404 = vmatpush1.msra.mxu0 0.0
    %405 = vmatprep.subr.mxu0 0.0
    %406 = vmatpush1.msra.mxu0 0.0
    %407 = vmatprep.subr.mxu0 0.0
    %408 = vmatpush1.msra.mxu0 0.0
    %409 = vmatprep.subr.mxu0 0.0
    %410 = vmatpush1.msra.mxu0 0.0
    %411 = vmatprep.subr.mxu0 0.0
    %412 = vmatpush1.msra.mxu0 0.0
    %413 = vmatprep.subr.mxu0 0.0
    %414 = vmatpush1.msra.mxu0 0.0
    %415 = vmatprep.subr.mxu0 0.0
    %416 = vmatpush1.msra.mxu0 0.0
    %417 = vmatprep.subr.mxu0 0.0
    %418 = vmatpush1.msra.mxu0 0.0
    %419 = vmatprep.subr.mxu0 0.0
    %420 = vmatpush1.msra.mxu0 0.0
    %421 = vmatprep.subr.mxu0 0.0
    %422 = vmatpush1.msra.mxu0 0.0
    %423 = vmatprep.mubr.f32.mxu0 0.0
    %424 = vmatmul.mubr.f32.gmra.mrb[0].mxu0 %v357
    %v425 = vpop.f32.mrb[0].mxu0
    %v426 = vadd.f32 0.0, %v425
    %v427 = vpop.f32.mrb[0].mxu0
    %428 = vdwg.mxu0
    %vm429 = vcmask 58368
    %430 = vst.msk [vmem:[#allocation2] sm:$0x3] %vm429, %v426
    // Predicated region
    $region18: #{tpu_custom_call.1} parent=1 // pred_check
      _
    $region19: #{tpu_custom_call.1} parent=1 // pred_check_branch
      %432 = sbr.rel (0) target = $region21
    $region20: #{tpu_custom_call.1} parent=1 // pred_region
      %s434 = ssub.s32 32, 32
      %435 = vsyncadd [#allocation3], %s434
      %s437 = sshll.u32 [#allocation2], 4
      %s438 = int_to_ptr.vmem [resolvable:$true] %s437
      %440 = dma.vmem_to_hbm [thread:$0]  %s438, 32, %s4, [#allocation3]
    $region21: #{tpu_custom_call.1} parent=1 // pred_fallthru
      _
    // Predicated region
    $region22: #{tpu_custom_call.1} parent=1 // pred_check
      _
    $region23: #{tpu_custom_call.1} parent=1 // pred_check_branch
      %442 = sbr.rel (0) target = $region25
    $region24: #{tpu_custom_call.1} parent=1 // pred_region
      %s444 = ssub.s32 128, 128
      %445 = vsyncadd [#allocation5], %s444
      %s446 = sshll.u32 [#allocation4], 4
      %s447 = int_to_ptr.vmem [resolvable:$true] %s446
      %452 = dma.vmem_to_hbm [thread:$0]  %s447, 128, %s5, [#allocation5], 64, 64, 4
    $region25: #{tpu_custom_call.1} parent=1 // pred_fallthru
      _
    // Predicated region
    $region26: #{tpu_custom_call.1} parent=1 // pred_check
      _
    $region27: #{tpu_custom_call.1} parent=1 // pred_check_branch
      %454 = sbr.rel (0) target = $region29
    $region28: #{tpu_custom_call.1} parent=1 // pred_region
      %455 = dma.done [#allocation3], 32
    $region29: #{tpu_custom_call.1} parent=1 // pred_fallthru
      _
    // Predicated region
    $region30: #{tpu_custom_call.1} parent=1 // pred_check
      _
    $region31: #{tpu_custom_call.1} parent=1 // pred_check_branch
      %457 = sbr.rel (0) target = $region33
    $region32: #{tpu_custom_call.1} parent=1 // pred_region
      %458 = dma.done [#allocation5], 128
    $region33: #{tpu_custom_call.1} parent=1 // pred_fallthru
      _
    %459 = vsyncpa [#allocation3], 1
    %460 = vsyncpa [#allocation5], 1

</llo_original>
